<compile_context>
chip_gen: v7x
topology: tpu7x:2x2x1
jax: 0.10.0
libtpu: 0.0.40
codegen_flags: <defaults>
</compile_context>

<pallas_src>
import functools

import jax
import jax.numpy as jnp
from jax.experimental import pallas as pl
from jax.experimental.pallas import tpu as pltpu


def _round_up(v, mult):
    return ((v + mult - 1) // mult) * mult


def _adaptor_kernel(x_ref, w1_ref, b1_ref, w2_ref, b2_ref,
                    w3_ref, b3_ref, w4_ref, b4_ref, o_ref):
    """Fused MLP tile: relu(relu(relu(xW1+b1)W2+b2)W3+b3)W4+b4.

    Dot operands stay in the narrow compute dtype (MXU runs bf16 at >=2x f32
    on all generations); bias add + ReLU run on the f32 accumulator (VPU has
    slack while the MXU is the binding unit, and v5e has no bf16 VPU path).
    """
    cdt = w1_ref.dtype  # compute dtype of the MXU operands

    h = jnp.dot(x_ref[...], w1_ref[...], preferred_element_type=jnp.float32)
    h = jnp.maximum(h + b1_ref[...], 0.0).astype(cdt)

    h = jnp.dot(h, w2_ref[...], preferred_element_type=jnp.float32)
    h = jnp.maximum(h + b2_ref[...], 0.0).astype(cdt)

    h = jnp.dot(h, w3_ref[...], preferred_element_type=jnp.float32)
    h = jnp.maximum(h + b3_ref[...], 0.0).astype(cdt)

    o = jnp.dot(h, w4_ref[...], preferred_element_type=jnp.float32) + b4_ref[...]
    o_ref[...] = o.astype(o_ref.dtype)


@functools.partial(jax.jit, static_argnames=("compute_dtype", "tm_max"))
def feature_adaptor(x, params, *, compute_dtype=jnp.bfloat16, tm_max=512):
    """x: (..., D) float array.  params: w1..w4 as (in, out), b1..b4 as (1, out)."""
    *lead, d = x.shape
    m = 1
    for s in lead:
        m *= s

    dims = [d, d // 2, d // 4, d // 2, d]
    pdims = [_round_up(v, 128) for v in dims]   # lane-dense feature widths

    # Pad + cast input to the compute dtype (feature dim -> lane axis).
    x2d = x.reshape(m, d)
    if pdims[0] != d:
        x2d = jnp.pad(x2d, ((0, 0), (0, pdims[0] - d)))
    x2d = x2d.astype(compute_dtype)

    # Pad + cast weights (compute dtype) and biases (f32).  Zero padding keeps
    # the math exact; padded output columns are sliced off below.
    ws, bs = [], []
    for i in range(4):
        w = params[f"w{i + 1}"]
        b = params[f"b{i + 1}"]
        w = jnp.pad(w, ((0, pdims[i] - dims[i]), (0, pdims[i + 1] - dims[i + 1])))
        b = jnp.pad(b, ((0, 0), (0, pdims[i + 1] - dims[i + 1])))
        ws.append(w.astype(compute_dtype))
        bs.append(b.astype(jnp.float32))

    # Tile the row dimension; weights stay resident across grid steps.
    tm = min(tm_max, m)
    grid = (pl.cdiv(m, tm),)

    args = (x2d, ws[0], bs[0], ws[1], bs[1], ws[2], bs[2], ws[3], bs[3])
    resident = lambda a: pl.BlockSpec(a.shape, lambda i: (0, 0))
    in_specs = [pl.BlockSpec((tm, pdims[0]), lambda i: (i, 0))]
    in_specs += [resident(a) for a in args[1:]]

    out2d = pl.pallas_call(
        _adaptor_kernel,
        out_shape=jax.ShapeDtypeStruct((m, pdims[4]), x.dtype),
        grid=grid,
        in_specs=in_specs,
        out_specs=pl.BlockSpec((tm, pdims[4]), lambda i: (i, 0)),
        compiler_params=pltpu.CompilerParams(
            dimension_semantics=("parallel",),   # megacore-shard the M loop on v7x
            vmem_limit_bytes=48 << 20,           # headroom on v7x's 64 MiB VMEM
        ),
    )(*args)

    out2d = out2d[:, :d]
    return out2d.reshape(*lead, d)


def init_params(key, in_dim, dtype=jnp.float32):
    """Deterministic init matching nn.Linear's U(-1/sqrt(fan_in), 1/sqrt(fan_in)).

    Weights stored transposed as (in_features, out_features); biases as (1, out).
    """
    dims = [in_dim, in_dim // 2, in_dim // 4, in_dim // 2, in_dim]
    params = {}
    for i in range(4):
        fan_in, fan_out = dims[i], dims[i + 1]
        key, kw, kb = jax.random.split(key, 3)
        bound = 1.0 / (fan_in ** 0.5)
        params[f"w{i + 1}"] = jax.random.uniform(
            kw, (fan_in, fan_out), dtype=dtype, minval=-bound, maxval=bound)
        params[f"b{i + 1}"] = jax.random.uniform(
            kb, (1, fan_out), dtype=dtype, minval=-bound, maxval=bound)
    return params


def feature_adaptor_ref(x, params, compute_dtype=jnp.bfloat16):
    """Pure-JAX reference using the same narrow-operand / f32-accumulate numerics."""
    def layer(h, w, b, act):
        y = jnp.dot(h.astype(compute_dtype), w.astype(compute_dtype),
                    preferred_element_type=jnp.float32) + b[0].astype(jnp.float32)
        return jnp.maximum(y, 0.0) if act else y

    h = layer(x, params["w1"], params["b1"], True)
    h = layer(h, params["w2"], params["b2"], True)
    h = layer(h, params["w3"], params["b3"], True)
    return layer(h, params["w4"], params["b4"], False).astype(x.dtype)


if __name__ == "__main__":
    key = jax.random.PRNGKey(0)
    k_x, k_p = jax.random.split(key)

    batch, seq, in_dim = 2, 8, 32          # small shapes consistent with the module
    x = jax.random.normal(k_x, (batch, seq, in_dim), dtype=jnp.float32)
    params = init_params(k_p, in_dim)

    out = feature_adaptor(x, params)
    out = jax.block_until_ready(out)

    ref = feature_adaptor_ref(x, params, compute_dtype=jnp.bfloat16)
    assert out.shape == x.shape, (out.shape, x.shape)
    max_err = float(jnp.max(jnp.abs(out - ref)))
    assert jnp.allclose(out, ref, atol=2e-2, rtol=2e-2), f"mismatch, max_err={max_err}"

    print("KERNEL_OK")
</pallas_src>

<mosaic_0001>
module attributes {stable_mosaic.version = 11 : i64} {
  func.func @_adaptor_kernel(%arg0: i32, %arg1: memref<16x128xbf16, #tpu.memory_space<vmem>>, %arg2: memref<128x128xbf16, #tpu.memory_space<vmem>>, %arg3: memref<1x128xf32, #tpu.memory_space<vmem>>, %arg4: memref<128x128xbf16, #tpu.memory_space<vmem>>, %arg5: memref<1x128xf32, #tpu.memory_space<vmem>>, %arg6: memref<128x128xbf16, #tpu.memory_space<vmem>>, %arg7: memref<1x128xf32, #tpu.memory_space<vmem>>, %arg8: memref<128x128xbf16, #tpu.memory_space<vmem>>, %arg9: memref<1x128xf32, #tpu.memory_space<vmem>>, %arg10: memref<16x128xf32, #tpu.memory_space<vmem>>) attributes {dimension_semantics = [#tpu.dimension_semantics<parallel>], iteration_bounds = array<i64: 1>, scalar_prefetch = 0 : i64, scratch_operands = 0 : i64, tpu.core_type = #tpu.core_type<tc>, window_params = [{transform_indices = @transform_0, window_bounds = array<i64: 16, 128>}, {pipeline_mode = #tpu.pipeline_mode<synchronous>, transform_indices = @transform_1, window_bounds = array<i64: 128, 128>}, {pipeline_mode = #tpu.pipeline_mode<synchronous>, transform_indices = @transform_2, window_bounds = array<i64: 1, 128>}, {pipeline_mode = #tpu.pipeline_mode<synchronous>, transform_indices = @transform_3, window_bounds = array<i64: 128, 128>}, {pipeline_mode = #tpu.pipeline_mode<synchronous>, transform_indices = @transform_4, window_bounds = array<i64: 1, 128>}, {pipeline_mode = #tpu.pipeline_mode<synchronous>, transform_indices = @transform_5, window_bounds = array<i64: 128, 128>}, {pipeline_mode = #tpu.pipeline_mode<synchronous>, transform_indices = @transform_6, window_bounds = array<i64: 1, 128>}, {pipeline_mode = #tpu.pipeline_mode<synchronous>, transform_indices = @transform_7, window_bounds = array<i64: 128, 128>}, {pipeline_mode = #tpu.pipeline_mode<synchronous>, transform_indices = @transform_8, window_bounds = array<i64: 1, 128>}, {transform_indices = @transform_9, window_bounds = array<i64: 16, 128>}]} {
    %c0 = arith.constant 0 : index
    %c0_0 = arith.constant 0 : index
    %0 = vector.load %arg1[%c0, %c0_0] : memref<16x128xbf16, #tpu.memory_space<vmem>>, vector<16x128xbf16>
    %c0_1 = arith.constant 0 : index
    %c0_2 = arith.constant 0 : index
    %1 = vector.load %arg2[%c0_1, %c0_2] : memref<128x128xbf16, #tpu.memory_space<vmem>>, vector<128x128xbf16>
    %cst = arith.constant dense<0.000000e+00> : vector<16x128xf32>
    %2 = tpu.matmul %0, %1, %cst {dimension_numbers = #tpu.dot_dimension_numbers<[1], [0], [0], [1], [0, 0, 1, 1], [], []>} : vector<16x128xbf16>, vector<128x128xbf16>, vector<16x128xf32> -> vector<16x128xf32>
    %c0_3 = arith.constant 0 : index
    %c0_4 = arith.constant 0 : index
    %3 = vector.load %arg3[%c0_3, %c0_4] : memref<1x128xf32, #tpu.memory_space<vmem>>, vector<1x128xf32>
    %4 = vector.broadcast %3 : vector<1x128xf32> to vector<16x128xf32>
    %5 = arith.addf %2, %4 : vector<16x128xf32>
    %cst_5 = arith.constant 0.000000e+00 : f32
    %6 = vector.broadcast %cst_5 : f32 to vector<16x128xf32>
    %7 = arith.maximumf %5, %6 : vector<16x128xf32>
    %8 = arith.truncf %7 : vector<16x128xf32> to vector<16x128xbf16>
    %c0_6 = arith.constant 0 : index
    %c0_7 = arith.constant 0 : index
    %9 = vector.load %arg4[%c0_6, %c0_7] : memref<128x128xbf16, #tpu.memory_space<vmem>>, vector<128x128xbf16>
    %cst_8 = arith.constant dense<0.000000e+00> : vector<16x128xf32>
    %10 = tpu.matmul %8, %9, %cst_8 {dimension_numbers = #tpu.dot_dimension_numbers<[1], [0], [0], [1], [0, 0, 1, 1], [], []>} : vector<16x128xbf16>, vector<128x128xbf16>, vector<16x128xf32> -> vector<16x128xf32>
    %c0_9 = arith.constant 0 : index
    %c0_10 = arith.constant 0 : index
    %11 = vector.load %arg5[%c0_9, %c0_10] : memref<1x128xf32, #tpu.memory_space<vmem>>, vector<1x128xf32>
    %12 = vector.broadcast %11 : vector<1x128xf32> to vector<16x128xf32>
    %13 = arith.addf %10, %12 : vector<16x128xf32>
    %cst_11 = arith.constant 0.000000e+00 : f32
    %14 = vector.broadcast %cst_11 : f32 to vector<16x128xf32>
    %15 = arith.maximumf %13, %14 : vector<16x128xf32>
    %16 = arith.truncf %15 : vector<16x128xf32> to vector<16x128xbf16>
    %c0_12 = arith.constant 0 : index
    %c0_13 = arith.constant 0 : index
    %17 = vector.load %arg6[%c0_12, %c0_13] : memref<128x128xbf16, #tpu.memory_space<vmem>>, vector<128x128xbf16>
    %cst_14 = arith.constant dense<0.000000e+00> : vector<16x128xf32>
    %18 = tpu.matmul %16, %17, %cst_14 {dimension_numbers = #tpu.dot_dimension_numbers<[1], [0], [0], [1], [0, 0, 1, 1], [], []>} : vector<16x128xbf16>, vector<128x128xbf16>, vector<16x128xf32> -> vector<16x128xf32>
    %c0_15 = arith.constant 0 : index
    %c0_16 = arith.constant 0 : index
    %19 = vector.load %arg7[%c0_15, %c0_16] : memref<1x128xf32, #tpu.memory_space<vmem>>, vector<1x128xf32>
    %20 = vector.broadcast %19 : vector<1x128xf32> to vector<16x128xf32>
    %21 = arith.addf %18, %20 : vector<16x128xf32>
    %cst_17 = arith.constant 0.000000e+00 : f32
    %22 = vector.broadcast %cst_17 : f32 to vector<16x128xf32>
    %23 = arith.maximumf %21, %22 : vector<16x128xf32>
    %24 = arith.truncf %23 : vector<16x128xf32> to vector<16x128xbf16>
    %c0_18 = arith.constant 0 : index
    %c0_19 = arith.constant 0 : index
    %25 = vector.load %arg8[%c0_18, %c0_19] : memref<128x128xbf16, #tpu.memory_space<vmem>>, vector<128x128xbf16>
    %cst_20 = arith.constant dense<0.000000e+00> : vector<16x128xf32>
    %26 = tpu.matmul %24, %25, %cst_20 {dimension_numbers = #tpu.dot_dimension_numbers<[1], [0], [0], [1], [0, 0, 1, 1], [], []>} : vector<16x128xbf16>, vector<128x128xbf16>, vector<16x128xf32> -> vector<16x128xf32>
    %c0_21 = arith.constant 0 : index
    %c0_22 = arith.constant 0 : index
    %27 = vector.load %arg9[%c0_21, %c0_22] : memref<1x128xf32, #tpu.memory_space<vmem>>, vector<1x128xf32>
    %28 = vector.broadcast %27 : vector<1x128xf32> to vector<16x128xf32>
    %29 = arith.addf %26, %28 : vector<16x128xf32>
    %c0_23 = arith.constant 0 : index
    %c0_24 = arith.constant 0 : index
    %30 = vector.load %arg10[%c0_23, %c0_24] : memref<16x128xf32, #tpu.memory_space<vmem>>, vector<16x128xf32>
    tpu.vector_store %arg10[%c0_23, %c0_24], %29 {strides = array<i32>} : memref<16x128xf32, #tpu.memory_space<vmem>>, vector<16x128xf32>,
    return
  }
  func.func @transform_0(%arg0: i32) -> (i32, i32) {
    %c0_i32 = arith.constant 0 : i32
    %c0_i32_0 = arith.constant 0 : i32
    return %arg0, %c0_i32 : i32, i32
  }
  func.func @transform_1(%arg0: i32) -> (i32, i32) {
    %c0_i32 = arith.constant 0 : i32
    %c0_i32_0 = arith.constant 0 : i32
    %c0_i32_1 = arith.constant 0 : i32
    return %c0_i32, %c0_i32_0 : i32, i32
  }
  func.func @transform_2(%arg0: i32) -> (i32, i32) {
    %c0_i32 = arith.constant 0 : i32
    %c0_i32_0 = arith.constant 0 : i32
    %c0_i32_1 = arith.constant 0 : i32
    return %c0_i32, %c0_i32_0 : i32, i32
  }
  func.func @transform_3(%arg0: i32) -> (i32, i32) {
    %c0_i32 = arith.constant 0 : i32
    %c0_i32_0 = arith.constant 0 : i32
    %c0_i32_1 = arith.constant 0 : i32
    return %c0_i32, %c0_i32_0 : i32, i32
  }
  func.func @transform_4(%arg0: i32) -> (i32, i32) {
    %c0_i32 = arith.constant 0 : i32
    %c0_i32_0 = arith.constant 0 : i32
    %c0_i32_1 = arith.constant 0 : i32
    return %c0_i32, %c0_i32_0 : i32, i32
  }
  func.func @transform_5(%arg0: i32) -> (i32, i32) {
    %c0_i32 = arith.constant 0 : i32
    %c0_i32_0 = arith.constant 0 : i32
    %c0_i32_1 = arith.constant 0 : i32
    return %c0_i32, %c0_i32_0 : i32, i32
  }
  func.func @transform_6(%arg0: i32) -> (i32, i32) {
    %c0_i32 = arith.constant 0 : i32
    %c0_i32_0 = arith.constant 0 : i32
    %c0_i32_1 = arith.constant 0 : i32
    return %c0_i32, %c0_i32_0 : i32, i32
  }
  func.func @transform_7(%arg0: i32) -> (i32, i32) {
    %c0_i32 = arith.constant 0 : i32
    %c0_i32_0 = arith.constant 0 : i32
    %c0_i32_1 = arith.constant 0 : i32
    return %c0_i32, %c0_i32_0 : i32, i32
  }
  func.func @transform_8(%arg0: i32) -> (i32, i32) {
    %c0_i32 = arith.constant 0 : i32
    %c0_i32_0 = arith.constant 0 : i32
    %c0_i32_1 = arith.constant 0 : i32
    return %c0_i32, %c0_i32_0 : i32, i32
  }
  func.func @transform_9(%arg0: i32) -> (i32, i32) {
    %c0_i32 = arith.constant 0 : i32
    %c0_i32_0 = arith.constant 0 : i32
    return %arg0, %c0_i32 : i32, i32
  }
}

</mosaic_0001>

<llo_original>
// kernel: feature_adaptor.1
$region0: #{feature_adaptor.1}
  #allocation0 [shape = 'u32[]', space=smem, size = 0x4, offset = 0x4, fixed_abs, tag = 'smem constant byte address 0x4 - core index']
  #allocation1 [shape = 'u32[144,128]{1,0:T(1,128)}', space=vmem, size = 0x12000, scoped, tag = 'internal scratch']
  %s0 = inlined_call_operand.vmem [shape: bf16[16,128], index: 0, kind: input, shape index: {}]
  %s1 = inlined_call_operand.vmem [shape: bf16[128,128], index: 1, kind: input, shape index: {}]
  %s2 = inlined_call_operand.vmem [shape: f32[1,128], index: 2, kind: input, shape index: {}]
  %s3 = inlined_call_operand.vmem [shape: bf16[128,128], index: 3, kind: input, shape index: {}]
  %s4 = inlined_call_operand.vmem [shape: f32[1,128], index: 4, kind: input, shape index: {}]
  %s5 = inlined_call_operand.vmem [shape: bf16[128,128], index: 5, kind: input, shape index: {}]
  %s6 = inlined_call_operand.vmem [shape: f32[1,128], index: 6, kind: input, shape index: {}]
  %s7 = inlined_call_operand.vmem [shape: bf16[128,128], index: 7, kind: input, shape index: {}]
  %s8 = inlined_call_operand.vmem [shape: f32[1,128], index: 8, kind: input, shape index: {}]
  %s9 = inlined_call_operand.vmem [shape: f32[16,128], index: 9, kind: output, shape index: {}]
  %s10 = sld [smem:[#allocation0]]
  $region46: #{feature_adaptor.1} parent=0
    _
  %s12 = ssub.s32 1, %s10
  %s13 = scalar_select 0, %s12, %s10
  // Predicated region
  $region2: #{feature_adaptor.1} parent=0 // pred_check
    _
  $region3: #{feature_adaptor.1} parent=0 // pred_check_branch
    %15 = sbr.rel (0) target = $region5
  $region4: #{feature_adaptor.1} parent=0 // pred_region
    _
  $region5: #{feature_adaptor.1} parent=0 // pred_fallthru
    _
  // Predicated region
  $region6: #{feature_adaptor.1} parent=0 // pred_check
    _
  $region7: #{feature_adaptor.1} parent=0 // pred_check_branch
    %17 = sbr.rel (0) target = $region9
  $region8: #{feature_adaptor.1} parent=0 // pred_region
    _
  $region9: #{feature_adaptor.1} parent=0 // pred_fallthru
    _
  // Predicated region
  $region10: #{feature_adaptor.1} parent=0 // pred_check
    _
  $region11: #{feature_adaptor.1} parent=0 // pred_check_branch
    %19 = sbr.rel (0) target = $region13
  $region12: #{feature_adaptor.1} parent=0 // pred_region
    _
  $region13: #{feature_adaptor.1} parent=0 // pred_fallthru
    _
  // Predicated region
  $region14: #{feature_adaptor.1} parent=0 // pred_check
    _
  $region15: #{feature_adaptor.1} parent=0 // pred_check_branch
    %21 = sbr.rel (0) target = $region17
  $region16: #{feature_adaptor.1} parent=0 // pred_region
    _
  $region17: #{feature_adaptor.1} parent=0 // pred_fallthru
    _
  // Predicated region
  $region18: #{feature_adaptor.1} parent=0 // pred_check
    _
  $region19: #{feature_adaptor.1} parent=0 // pred_check_branch
    %23 = sbr.rel (0) target = $region21
  $region20: #{feature_adaptor.1} parent=0 // pred_region
    _
  $region21: #{feature_adaptor.1} parent=0 // pred_fallthru
    _
  // Predicated region
  $region22: #{feature_adaptor.1} parent=0 // pred_check
    _
  $region23: #{feature_adaptor.1} parent=0 // pred_check_branch
    %25 = sbr.rel (0) target = $region25
  $region24: #{feature_adaptor.1} parent=0 // pred_region
    _
  $region25: #{feature_adaptor.1} parent=0 // pred_fallthru
    _
  // Predicated region
  $region26: #{feature_adaptor.1} parent=0 // pred_check
    _
  $region27: #{feature_adaptor.1} parent=0 // pred_check_branch
    %27 = sbr.rel (0) target = $region29
  $region28: #{feature_adaptor.1} parent=0 // pred_region
    _
  $region29: #{feature_adaptor.1} parent=0 // pred_fallthru
    _
  // Predicated region
  $region30: #{feature_adaptor.1} parent=0 // pred_check
    _
  $region31: #{feature_adaptor.1} parent=0 // pred_check_branch
    %29 = sbr.rel (0) target = $region33
  $region32: #{feature_adaptor.1} parent=0 // pred_region
    _
  $region33: #{feature_adaptor.1} parent=0 // pred_fallthru
    _
  // Predicated region
  $region34: #{feature_adaptor.1} parent=0 // pred_check
    _
  $region35: #{feature_adaptor.1} parent=0 // pred_check_branch
    %31 = sbr.rel (0) target = $region37
  $region36: #{feature_adaptor.1} parent=0 // pred_region
    _
  $region37: #{feature_adaptor.1} parent=0 // pred_fallthru
    _
  %v33 = vld [vmem:[%s0] sm:$0xf]
  %v34 = vld [vmem:[%s0 + $0x4] sm:$0xf]
  %v35 = vld [vmem:[%s1] sm:$0xf]
  %v36 = vld [vmem:[%s1 + $0x4] sm:$0xf]
  %v37 = vld [vmem:[%s1 + $0x8] sm:$0xf]
  %v38 = vld [vmem:[%s1 + $0xc] sm:$0xf]
  %v39 = vld [vmem:[%s1 + $0x10] sm:$0xf]
  %v40 = vld [vmem:[%s1 + $0x14] sm:$0xf]
  %v41 = vld [vmem:[%s1 + $0x18] sm:$0xf]
  %v42 = vld [vmem:[%s1 + $0x1c] sm:$0xf]
  %v43 = vld [vmem:[%s1 + $0x20] sm:$0xf]
  %v44 = vld [vmem:[%s1 + $0x24] sm:$0xf]
  %v45 = vld [vmem:[%s1 + $0x28] sm:$0xf]
  %v46 = vld [vmem:[%s1 + $0x2c] sm:$0xf]
  %v47 = vld [vmem:[%s1 + $0x30] sm:$0xf]
  %v48 = vld [vmem:[%s1 + $0x34] sm:$0xf]
  %v49 = vld [vmem:[%s1 + $0x38] sm:$0xf]
  %v50 = vld [vmem:[%s1 + $0x3c] sm:$0xf]
  %v51 = vld [vmem:[%s2] sm:$0x1]
  %v53 = vlaneseq
  %v54 = vshrl.u32 %v53, 7
  %v55 = vsub.s32 0, %v54
  %v56 = vrot.slane %v51, %v55
  %v60 = vunpack.c.l.b16 %v33
  %v61 = vunpack.c.l.b16 %v34
  %v62 = vpack.c.b16 %v61, %v60
  %v80 = vunpack.c.l.b16 %v35
  %v81 = vunpack.c.l.b16 %v36
  %v82 = vunpack.c.l.b16 %v37
  %v83 = vunpack.c.l.b16 %v38
  %v84 = vunpack.c.l.b16 %v39
  %v85 = vunpack.c.l.b16 %v40
  %v86 = vunpack.c.l.b16 %v41
  %v87 = vunpack.c.l.b16 %v42
  %v88 = vunpack.c.l.b16 %v43
  %v89 = vunpack.c.l.b16 %v44
  %v90 = vunpack.c.l.b16 %v45
  %v91 = vunpack.c.l.b16 %v46
  %v92 = vunpack.c.l.b16 %v47
  %v93 = vunpack.c.l.b16 %v48
  %v94 = vunpack.c.l.b16 %v49
  %v95 = vunpack.c.l.b16 %v50
  %v96 = vpack.c.b16 %v81, %v80
  %v97 = vpack.c.b16 %v83, %v82
  %v98 = vpack.c.b16 %v85, %v84
  %v99 = vpack.c.b16 %v87, %v86
  %v100 = vpack.c.b16 %v89, %v88
  %v101 = vpack.c.b16 %v91, %v90
  %v102 = vpack.c.b16 %v93, %v92
  %v103 = vpack.c.b16 %v95, %v94
  %112 = vmatprep.subr.bf16.mxu0 0
  %113 = vmatpush1.bf16.msra.mxu0 %v96
  %114 = vmatprep.subr.bf16.mxu0 0
  %115 = vmatpush1.bf16.msra.mxu0 %v97
  %116 = vmatprep.subr.bf16.mxu0 0
  %117 = vmatpush1.bf16.msra.mxu0 %v98
  %118 = vmatprep.subr.bf16.mxu0 0
  %119 = vmatpush1.bf16.msra.mxu0 %v99
  %120 = vmatprep.subr.bf16.mxu0 0
  %121 = vmatpush1.bf16.msra.mxu0 %v100
  %122 = vmatprep.subr.bf16.mxu0 0
  %123 = vmatpush1.bf16.msra.mxu0 %v101
  %124 = vmatprep.subr.bf16.mxu0 0
  %125 = vmatpush1.bf16.msra.mxu0 %v102
  %126 = vmatprep.subr.bf16.mxu0 0
  %127 = vmatpush1.bf16.msra.mxu0 %v103
  %128 = vmatprep.subr.bf16.mxu0 0
  %129 = vmatpush1.bf16.msra.mxu0 0
  %130 = vmatprep.subr.bf16.mxu0 0
  %131 = vmatpush1.bf16.msra.mxu0 0
  %132 = vmatprep.subr.bf16.mxu0 0
  %133 = vmatpush1.bf16.msra.mxu0 0
  %134 = vmatprep.subr.bf16.mxu0 0
  %135 = vmatpush1.bf16.msra.mxu0 0
  %136 = vmatprep.subr.bf16.mxu0 0
  %137 = vmatpush1.bf16.msra.mxu0 0
  %138 = vmatprep.subr.bf16.mxu0 0
  %139 = vmatpush1.bf16.msra.mxu0 0
  %140 = vmatprep.subr.bf16.mxu0 0
  %141 = vmatpush1.bf16.msra.mxu0 0
  %142 = vmatprep.subr.bf16.mxu0 0
  %143 = vmatpush1.bf16.msra.mxu0 0
  %144 = vmatprep.mubr.bf16.mxu0 0
  %145 = vmatmul.mubr.bf16.gmra.mrb[0].mxu0 %v62
  %v146 = vpop.f32.mrb[0].mxu0
  %v147 = vadd.f32 %v56, %v146
  %v148 = vpop.f32.mrb[0].mxu0
  %v149 = vpop.f32.mrb[0].mxu0
  %v150 = vadd.f32 %v56, %v149
  %v151 = vpop.f32.mrb[0].mxu0
  %152 = vdwg.mxu0
  %v153 = vmax.f32 %v147, 0.0
  %v154 = vmax.f32 %v150, 0.0
  %v155 = vpack.c.bf16 %v154, %v153
  %v156 = vld [vmem:[%s3] sm:$0xf]
  %v157 = vld [vmem:[%s3 + $0x4] sm:$0xf]
  %v158 = vld [vmem:[%s3 + $0x8] sm:$0xf]
  %v159 = vld [vmem:[%s3 + $0xc] sm:$0xf]
  %v160 = vld [vmem:[%s3 + $0x10] sm:$0xf]
  %v161 = vld [vmem:[%s3 + $0x14] sm:$0xf]
  %v162 = vld [vmem:[%s3 + $0x18] sm:$0xf]
  %v163 = vld [vmem:[%s3 + $0x1c] sm:$0xf]
  %v164 = vld [vmem:[%s3 + $0x20] sm:$0xf]
  %v165 = vld [vmem:[%s3 + $0x24] sm:$0xf]
  %v166 = vld [vmem:[%s3 + $0x28] sm:$0xf]
  %v167 = vld [vmem:[%s3 + $0x2c] sm:$0xf]
  %v168 = vld [vmem:[%s3 + $0x30] sm:$0xf]
  %v169 = vld [vmem:[%s3 + $0x34] sm:$0xf]
  %v170 = vld [vmem:[%s3 + $0x38] sm:$0xf]
  %v171 = vld [vmem:[%s3 + $0x3c] sm:$0xf]
  %v172 = vld [vmem:[%s4] sm:$0x1]
  %v174 = vlaneseq
  %v175 = vshrl.u32 %v174, 7
  %v176 = vsub.s32 0, %v175
  %v177 = vrot.slane %v172, %v176
  %v195 = vunpack.c.l.b16 %v156
  %v196 = vunpack.c.l.b16 %v157
  %v197 = vunpack.c.l.b16 %v158
  %v198 = vunpack.c.l.b16 %v159
  %v199 = vunpack.c.l.b16 %v160
  %v200 = vunpack.c.l.b16 %v161
  %v201 = vunpack.c.l.b16 %v162
  %v202 = vunpack.c.l.b16 %v163
  %v203 = vunpack.c.l.b16 %v164
  %v204 = vunpack.c.l.b16 %v165
  %v205 = vunpack.c.l.b16 %v166
  %v206 = vunpack.c.l.b16 %v167
  %v207 = vunpack.c.l.b16 %v168
  %v208 = vunpack.c.l.b16 %v169
  %v209 = vunpack.c.l.b16 %v170
  %v210 = vunpack.c.l.b16 %v171
  %v211 = vpack.c.b16 %v196, %v195
  %v212 = vpack.c.b16 %v198, %v197
  %v213 = vpack.c.b16 %v200, %v199
  %v214 = vpack.c.b16 %v202, %v201
  %v215 = vpack.c.b16 %v204, %v203
  %v216 = vpack.c.b16 %v206, %v205
  %v217 = vpack.c.b16 %v208, %v207
  %v218 = vpack.c.b16 %v210, %v209
  %227 = vmatprep.subr.bf16.mxu0 0
  %228 = vmatpush1.bf16.msra.mxu0 %v211
  %229 = vmatprep.subr.bf16.mxu0 0
  %230 = vmatpush1.bf16.msra.mxu0 %v212
  %231 = vmatprep.subr.bf16.mxu0 0
  %232 = vmatpush1.bf16.msra.mxu0 %v213
  %233 = vmatprep.subr.bf16.mxu0 0
  %234 = vmatpush1.bf16.msra.mxu0 %v214
  %235 = vmatprep.subr.bf16.mxu0 0
  %236 = vmatpush1.bf16.msra.mxu0 %v215
  %237 = vmatprep.subr.bf16.mxu0 0
  %238 = vmatpush1.bf16.msra.mxu0 %v216
  %239 = vmatprep.subr.bf16.mxu0 0
  %240 = vmatpush1.bf16.msra.mxu0 %v217
  %241 = vmatprep.subr.bf16.mxu0 0
  %242 = vmatpush1.bf16.msra.mxu0 %v218
  %243 = vmatprep.subr.bf16.mxu0 0
  %244 = vmatpush1.bf16.msra.mxu0 0
  %245 = vmatprep.subr.bf16.mxu0 0
  %246 = vmatpush1.bf16.msra.mxu0 0
  %247 = vmatprep.subr.bf16.mxu0 0
  %248 = vmatpush1.bf16.msra.mxu0 0
  %249 = vmatprep.subr.bf16.mxu0 0
  %250 = vmatpush1.bf16.msra.mxu0 0
  %251 = vmatprep.subr.bf16.mxu0 0
  %252 = vmatpush1.bf16.msra.mxu0 0
  %253 = vmatprep.subr.bf16.mxu0 0
  %254 = vmatpush1.bf16.msra.mxu0 0
  %255 = vmatprep.subr.bf16.mxu0 0
  %256 = vmatpush1.bf16.msra.mxu0 0
  %257 = vmatprep.subr.bf16.mxu0 0
  %258 = vmatpush1.bf16.msra.mxu0 0
  %259 = vmatprep.mubr.bf16.mxu0 0
  %260 = vmatmul.mubr.bf16.gmra.mrb[0].mxu0 %v155
  %v261 = vpop.f32.mrb[0].mxu0
  %v262 = vadd.f32 %v177, %v261
  %v263 = vpop.f32.mrb[0].mxu0
  %v264 = vpop.f32.mrb[0].mxu0
  %v265 = vadd.f32 %v177, %v264
  %v266 = vpop.f32.mrb[0].mxu0
  %267 = vdwg.mxu0
  %v268 = vmax.f32 %v262, 0.0
  %v269 = vmax.f32 %v265, 0.0
  %v270 = vpack.c.bf16 %v269, %v268
  %v271 = vld [vmem:[%s5] sm:$0xf]
  %v272 = vld [vmem:[%s5 + $0x4] sm:$0xf]
  %v273 = vld [vmem:[%s5 + $0x8] sm:$0xf]
  %v274 = vld [vmem:[%s5 + $0xc] sm:$0xf]
  %v275 = vld [vmem:[%s5 + $0x10] sm:$0xf]
  %v276 = vld [vmem:[%s5 + $0x14] sm:$0xf]
  %v277 = vld [vmem:[%s5 + $0x18] sm:$0xf]
  %v278 = vld [vmem:[%s5 + $0x1c] sm:$0xf]
  %v279 = vld [vmem:[%s5 + $0x20] sm:$0xf]
  %v280 = vld [vmem:[%s5 + $0x24] sm:$0xf]
  %v281 = vld [vmem:[%s5 + $0x28] sm:$0xf]
  %v282 = vld [vmem:[%s5 + $0x2c] sm:$0xf]
  %v283 = vld [vmem:[%s5 + $0x30] sm:$0xf]
  %v284 = vld [vmem:[%s5 + $0x34] sm:$0xf]
  %v285 = vld [vmem:[%s5 + $0x38] sm:$0xf]
  %v286 = vld [vmem:[%s5 + $0x3c] sm:$0xf]
  %v287 = vld [vmem:[%s6] sm:$0x1]
  %v289 = vlaneseq
  %v290 = vshrl.u32 %v289, 7
  %v291 = vsub.s32 0, %v290
  %v292 = vrot.slane %v287, %v291
  %v310 = vunpack.c.l.b16 %v271
  %v311 = vunpack.c.l.b16 %v272
  %v312 = vunpack.c.l.b16 %v273
  %v313 = vunpack.c.l.b16 %v274
  %v314 = vunpack.c.l.b16 %v275
  %v315 = vunpack.c.l.b16 %v276
  %v316 = vunpack.c.l.b16 %v277
  %v317 = vunpack.c.l.b16 %v278
  %v318 = vunpack.c.l.b16 %v279
  %v319 = vunpack.c.l.b16 %v280
  %v320 = vunpack.c.l.b16 %v281
  %v321 = vunpack.c.l.b16 %v282
  %v322 = vunpack.c.l.b16 %v283
  %v323 = vunpack.c.l.b16 %v284
  %v324 = vunpack.c.l.b16 %v285
  %v325 = vunpack.c.l.b16 %v286
  %v326 = vpack.c.b16 %v311, %v310
  %v327 = vpack.c.b16 %v313, %v312
  %v328 = vpack.c.b16 %v315, %v314
  %v329 = vpack.c.b16 %v317, %v316
  %v330 = vpack.c.b16 %v319, %v318
  %v331 = vpack.c.b16 %v321, %v320
  %v332 = vpack.c.b16 %v323, %v322
  %v333 = vpack.c.b16 %v325, %v324
  %342 = vmatprep.subr.bf16.mxu0 0
  %343 = vmatpush1.bf16.msra.mxu0 %v326
  %344 = vmatprep.subr.bf16.mxu0 0
  %345 = vmatpush1.bf16.msra.mxu0 %v327
  %346 = vmatprep.subr.bf16.mxu0 0
  %347 = vmatpush1.bf16.msra.mxu0 %v328
  %348 = vmatprep.subr.bf16.mxu0 0
  %349 = vmatpush1.bf16.msra.mxu0 %v329
  %350 = vmatprep.subr.bf16.mxu0 0
  %351 = vmatpush1.bf16.msra.mxu0 %v330
  %352 = vmatprep.subr.bf16.mxu0 0
  %353 = vmatpush1.bf16.msra.mxu0 %v331
  %354 = vmatprep.subr.bf16.mxu0 0
  %355 = vmatpush1.bf16.msra.mxu0 %v332
  %356 = vmatprep.subr.bf16.mxu0 0
  %357 = vmatpush1.bf16.msra.mxu0 %v333
  %358 = vmatprep.subr.bf16.mxu0 0
  %359 = vmatpush1.bf16.msra.mxu0 0
  %360 = vmatprep.subr.bf16.mxu0 0
  %361 = vmatpush1.bf16.msra.mxu0 0
  %362 = vmatprep.subr.bf16.mxu0 0
  %363 = vmatpush1.bf16.msra.mxu0 0
  %364 = vmatprep.subr.bf16.mxu0 0
  %365 = vmatpush1.bf16.msra.mxu0 0
  %366 = vmatprep.subr.bf16.mxu0 0
  %367 = vmatpush1.bf16.msra.mxu0 0
  %368 = vmatprep.subr.bf16.mxu0 0
  %369 = vmatpush1.bf16.msra.mxu0 0
  %370 = vmatprep.subr.bf16.mxu0 0
  %371 = vmatpush1.bf16.msra.mxu0 0
  %372 = vmatprep.subr.bf16.mxu0 0
  %373 = vmatpush1.bf16.msra.mxu0 0
  %374 = vmatprep.mubr.bf16.mxu0 0
  %375 = vmatmul.mubr.bf16.gmra.mrb[0].mxu0 %v270
  %v376 = vpop.f32.mrb[0].mxu0
  %v377 = vadd.f32 %v292, %v376
  %v378 = vpop.f32.mrb[0].mxu0
  %v379 = vpop.f32.mrb[0].mxu0
  %v380 = vadd.f32 %v292, %v379
  %v381 = vpop.f32.mrb[0].mxu0
  %382 = vdwg.mxu0
  %v383 = vmax.f32 %v377, 0.0
  %v384 = vmax.f32 %v380, 0.0
  %v385 = vpack.c.bf16 %v384, %v383
  %v386 = vld [vmem:[%s7] sm:$0xf]
  %v387 = vld [vmem:[%s7 + $0x4] sm:$0xf]
  %v388 = vld [vmem:[%s7 + $0x8] sm:$0xf]
  %v389 = vld [vmem:[%s7 + $0xc] sm:$0xf]
  %v390 = vld [vmem:[%s7 + $0x10] sm:$0xf]
  %v391 = vld [vmem:[%s7 + $0x14] sm:$0xf]
  %v392 = vld [vmem:[%s7 + $0x18] sm:$0xf]
  %v393 = vld [vmem:[%s7 + $0x1c] sm:$0xf]
  %v394 = vld [vmem:[%s7 + $0x20] sm:$0xf]
  %v395 = vld [vmem:[%s7 + $0x24] sm:$0xf]
  %v396 = vld [vmem:[%s7 + $0x28] sm:$0xf]
  %v397 = vld [vmem:[%s7 + $0x2c] sm:$0xf]
  %v398 = vld [vmem:[%s7 + $0x30] sm:$0xf]
  %v399 = vld [vmem:[%s7 + $0x34] sm:$0xf]
  %v400 = vld [vmem:[%s7 + $0x38] sm:$0xf]
  %v401 = vld [vmem:[%s7 + $0x3c] sm:$0xf]
  %v402 = vld [vmem:[%s8] sm:$0x1]
  %v404 = vlaneseq
  %v405 = vshrl.u32 %v404, 7
  %v406 = vsub.s32 0, %v405
  %v407 = vrot.slane %v402, %v406
  %v425 = vunpack.c.l.b16 %v386
  %v426 = vunpack.c.l.b16 %v387
  %v427 = vunpack.c.l.b16 %v388
  %v428 = vunpack.c.l.b16 %v389
  %v429 = vunpack.c.l.b16 %v390
  %v430 = vunpack.c.l.b16 %v391
  %v431 = vunpack.c.l.b16 %v392
  %v432 = vunpack.c.l.b16 %v393
  %v433 = vunpack.c.l.b16 %v394
  %v434 = vunpack.c.l.b16 %v395
  %v435 = vunpack.c.l.b16 %v396
  %v436 = vunpack.c.l.b16 %v397
  %v437 = vunpack.c.l.b16 %v398
  %v438 = vunpack.c.l.b16 %v399
  %v439 = vunpack.c.l.b16 %v400
  %v440 = vunpack.c.l.b16 %v401
  %v441 = vpack.c.b16 %v426, %v425
  %v442 = vpack.c.b16 %v428, %v427
  %v443 = vpack.c.b16 %v430, %v429
  %v444 = vpack.c.b16 %v432, %v431
  %v445 = vpack.c.b16 %v434, %v433
  %v446 = vpack.c.b16 %v436, %v435
  %v447 = vpack.c.b16 %v438, %v437
  %v448 = vpack.c.b16 %v440, %v439
  %457 = vmatprep.subr.bf16.mxu0 0
  %458 = vmatpush1.bf16.msra.mxu0 %v441
  %459 = vmatprep.subr.bf16.mxu0 0
  %460 = vmatpush1.bf16.msra.mxu0 %v442
  %461 = vmatprep.subr.bf16.mxu0 0
  %462 = vmatpush1.bf16.msra.mxu0 %v443
  %463 = vmatprep.subr.bf16.mxu0 0
  %464 = vmatpush1.bf16.msra.mxu0 %v444
  %465 = vmatprep.subr.bf16.mxu0 0
  %466 = vmatpush1.bf16.msra.mxu0 %v445
  %467 = vmatprep.subr.bf16.mxu0 0
  %468 = vmatpush1.bf16.msra.mxu0 %v446
  %469 = vmatprep.subr.bf16.mxu0 0
  %470 = vmatpush1.bf16.msra.mxu0 %v447
  %471 = vmatprep.subr.bf16.mxu0 0
  %472 = vmatpush1.bf16.msra.mxu0 %v448
  %473 = vmatprep.subr.bf16.mxu0 0
  %474 = vmatpush1.bf16.msra.mxu0 0
  %475 = vmatprep.subr.bf16.mxu0 0
  %476 = vmatpush1.bf16.msra.mxu0 0
  %477 = vmatprep.subr.bf16.mxu0 0
  %478 = vmatpush1.bf16.msra.mxu0 0
  %479 = vmatprep.subr.bf16.mxu0 0
  %480 = vmatpush1.bf16.msra.mxu0 0
  %481 = vmatprep.subr.bf16.mxu0 0
  %482 = vmatpush1.bf16.msra.mxu0 0
  %483 = vmatprep.subr.bf16.mxu0 0
  %484 = vmatpush1.bf16.msra.mxu0 0
  %485 = vmatprep.subr.bf16.mxu0 0
  %486 = vmatpush1.bf16.msra.mxu0 0
  %487 = vmatprep.subr.bf16.mxu0 0
  %488 = vmatpush1.bf16.msra.mxu0 0
  %489 = vmatprep.mubr.bf16.mxu0 0
  %490 = vmatmul.mubr.bf16.gmra.mrb[0].mxu0 %v385
  %v491 = vpop.f32.mrb[0].mxu0
  %v492 = vadd.f32 %v407, %v491
  %v493 = vpop.f32.mrb[0].mxu0
  %v494 = vpop.f32.mrb[0].mxu0
  %v495 = vadd.f32 %v407, %v494
  %v496 = vpop.f32.mrb[0].mxu0
  %497 = vdwg.mxu0
  %498 = vst [vmem:[%s9] sm:$0xff] %v492
  %499 = vst [vmem:[%s9 + $0x8] sm:$0xff] %v495
  // Predicated region
  $region38: #{feature_adaptor.1} parent=0 // pred_check
    _
  $region39: #{feature_adaptor.1} parent=0 // pred_check_branch
    %501 = sbr.rel (0) target = $region41
  $region40: #{feature_adaptor.1} parent=0 // pred_region
    _
  $region41: #{feature_adaptor.1} parent=0 // pred_fallthru
    _
  // Predicated region
  $region42: #{feature_adaptor.1} parent=0 // pred_check
    _
  $region43: #{feature_adaptor.1} parent=0 // pred_check_branch
    %503 = sbr.rel (0) target = $region45
  $region44: #{feature_adaptor.1} parent=0 // pred_region
    _
  $region45: #{feature_adaptor.1} parent=0 // pred_fallthru
    _

</llo_original>
